<compile_context>
chip_gen: v7x
topology: tpu7x:2x2x1
jax: 0.10.0
libtpu: 0.0.40
codegen_flags: <defaults>
</compile_context>

<pallas_src>
import numpy as np
import jax
import jax.numpy as jnp
from jax.experimental import pallas as pl
from jax.experimental.pallas import tpu as pltpu


def _round_up(x, m):
    return (x + m - 1) // m * m


def _make_ldam_kernel(tb: int, b_valid: int):
    """Kernel closed over the static batch-tile size and true batch size."""
    mask_rows = (b_valid % tb) != 0   # last batch block is partial -> mask pad rows

    def kernel(x_ref, t_ref, mst_ref, wt_ref, out_ref):
        x = x_ref[...].astype(jnp.float32)      # [TB, C]; bf16 inputs upcast here
        t = t_ref[...]                          # [TB, 1] i32 target class
        ms_t = mst_ref[...]                     # [TB, 1] f32 = m_list[target] * s
        w_t = wt_ref[...]                       # [TB, 1] f32 = weight[target]
        TB, C = x.shape

        col = jax.lax.broadcasted_iota(jnp.int32, (TB, C), 1)
        is_t = col == t                         # bool mask of the target column

        # Margin only affects the target logit, so logsumexp over `final` is
        # the non-target sum plus one corrected term (no full-width `final`).
        mx = jnp.max(x, axis=1, keepdims=True)                              # [TB,1]
        e = jnp.exp(x - mx)                                                 # EUP
        s_excl = jnp.sum(jnp.where(is_t, 0.0, e), axis=1, keepdims=True)    # [TB,1]
        x_t = jnp.sum(jnp.where(is_t, x, 0.0), axis=1, keepdims=True)       # [TB,1]

        z_t = x_t - ms_t                        # margined target logit
        lse = mx + jnp.log(s_excl + jnp.exp(z_t - mx))
        per = w_t * (lse - z_t)                 # = -w[t] * log_softmax(final)[t]

        if mask_rows:
            row = (jax.lax.broadcasted_iota(jnp.int32, (TB, 1), 0)
                   + pl.program_id(0) * tb)
            valid = row < b_valid
            per = jnp.where(valid, per, 0.0)    # pad rows contribute nothing
            w_t = jnp.where(valid, w_t, 0.0)

        tot = jnp.sum(per)                      # per-block weighted-NLL numerator
        den = jnp.sum(w_t)                      # per-block weight denominator
        # Single full-sublane, lane-dense store: lanes 0-63 = tot, 64-127 = den.
        lane = jax.lax.broadcasted_iota(jnp.int32, (8, 128), 1)
        out_ref[...] = jnp.where(lane < 64, tot, den)

    return kernel


def ldam_loss_pallas(output_logits, target, m_list, s, per_cls_weights=None):
    """output_logits: [B, C] float (f32 or bf16), target: [B] int, m_list: [C]."""
    B, C = output_logits.shape
    x = output_logits                     # keep input dtype (bf16 halves HBM bytes)
    t = target.astype(jnp.int32)

    ms = m_list.astype(jnp.float32) * jnp.float32(s)
    if per_cls_weights is None:
        w = jnp.ones((C,), jnp.float32)
    else:
        w = per_cls_weights.astype(jnp.float32)

    # O(B) per-row lookups done once outside the kernel: removes the full-width
    # one-hot multiplies + extra lane reductions from the hot loop entirely.
    mst = jnp.take(ms, t).reshape(B, 1)
    wt = jnp.take(w, t).reshape(B, 1)
    t2 = t.reshape(B, 1)

    # Batch tile: ~1 MiB of logits, <= 512 rows, multiple of 8, and aim for
    # >= ~8 grid blocks when the batch allows (DMA overlap + v7x megacore).
    in_itemsize = jnp.dtype(x.dtype).itemsize
    bytes_per_row = max(1, C * in_itemsize)
    tb = (1 << 20) // bytes_per_row
    tb = min(tb, 512)
    tb = min(tb, -(-B // 8))
    tb = int(max(8, (tb // 8) * 8))
    nb = -(-B // tb)
    # TODO(synk): class-dimension tiling (online logsumexp over C) for class
    # counts so large that a single [8, C] row tile no longer fits VMEM.

    out = pl.pallas_call(
        _make_ldam_kernel(tb, B),
        out_shape=jax.ShapeDtypeStruct((nb * 8, 128), jnp.float32),
        grid_spec=pltpu.PrefetchScalarGridSpec(
            num_scalar_prefetch=0,
            grid=(nb,),
            in_specs=[
                pl.BlockSpec((tb, C), lambda i: (i, 0)),   # logits tile (streamed)
                pl.BlockSpec((tb, 1), lambda i: (i, 0)),   # target class
                pl.BlockSpec((tb, 1), lambda i: (i, 0)),   # m_list[target] * s
                pl.BlockSpec((tb, 1), lambda i: (i, 0)),   # weight[target]
            ],
            out_specs=pl.BlockSpec((8, 128), lambda i: (i, 0)),  # per-block partials
        ),
        compiler_params=pltpu.CompilerParams(
            dimension_semantics=("parallel",),   # megacore sharding on v7x
            vmem_limit_bytes=48 << 20,           # < 64 MiB per-core on v7x
        ),
    )(x, t2, mst, wt)

    # Tiny finalize in plain JAX keeps the grid axis fully parallel.
    totals = out[::8, 0]      # first row of each block
    denoms = out[::8, 64]
    return jnp.sum(totals) / jnp.sum(denoms)


class LDAMLossJax:
    """Deterministic re-implementation of the PyTorch LDAMLoss module forward."""

    def __init__(self, cls_num_list=None, max_m=0.5, s=30, reweight_epoch=-1):
        if cls_num_list is None:
            self.m_list = None
            return
        self.reweight_epoch = reweight_epoch
        m_list = 1.0 / np.sqrt(np.sqrt(np.asarray(cls_num_list, np.float64)))
        m_list = m_list * (max_m / np.max(m_list))
        self.m_list = jnp.asarray(m_list, jnp.float32)
        assert s > 0
        self.s = s
        if reweight_epoch != -1:
            beta = 0.9999
            effective_num = 1.0 - np.power(beta, cls_num_list)
            per_cls_weights = (1.0 - beta) / np.array(effective_num)
            per_cls_weights = per_cls_weights / np.sum(per_cls_weights) * len(cls_num_list)
            self.per_cls_weights_enabled = jnp.asarray(per_cls_weights, jnp.float32)
        else:
            self.per_cls_weights_enabled = None
        self.per_cls_weights = None

    def _hook_before_epoch(self, epoch):
        if self.reweight_epoch != -1:
            if epoch > self.reweight_epoch:
                self.per_cls_weights = self.per_cls_weights_enabled
            else:
                self.per_cls_weights = None

    def forward(self, output_logits, target):
        if self.m_list is None:
            # plain cross-entropy fallback: zero margin, unit weights
            C = output_logits.shape[1]
            return ldam_loss_pallas(output_logits, target,
                                    jnp.zeros((C,), jnp.float32), 1.0, None)
        return ldam_loss_pallas(output_logits, target, self.m_list, self.s,
                                self.per_cls_weights)


def _reference_loss(logits, target, m_list, s, w):
    # pure-JAX reference of the same math, for a sanity check
    B, C = logits.shape
    onehot = jax.nn.one_hot(target, C, dtype=jnp.float32)
    batch_m = (onehot * m_list[None, :]).sum(1, keepdims=True)
    x_m = logits - batch_m * s
    final = jnp.where(onehot > 0, x_m, logits)
    lse = jax.scipy.special.logsumexp(final, axis=1)
    logit_t = (onehot * final).sum(1)
    w_t = (onehot * w[None, :]).sum(1)
    return jnp.sum(-w_t * (logit_t - lse)) / jnp.sum(w_t)


if __name__ == "__main__":
    B, C = 8, 16
    cls_num_list = [200, 150, 100, 80, 60, 40, 30, 20, 15, 10, 8, 6, 4, 3, 2, 1]
    loss_mod = LDAMLossJax(cls_num_list=cls_num_list, max_m=0.5, s=30, reweight_epoch=-1)

    key = jax.random.PRNGKey(0)
    k1, k2, k3 = jax.random.split(key, 3)
    logits = jax.random.normal(k1, (B, C), jnp.float32) * 2.0
    target = jax.random.randint(k2, (B,), 0, C, jnp.int32)

    loss = loss_mod.forward(logits, target)
    jax.block_until_ready(loss)
    ref = _reference_loss(logits, target, loss_mod.m_list, loss_mod.s,
                          jnp.ones((C,), jnp.float32))
    assert jnp.allclose(loss, ref, rtol=1e-5, atol=1e-5), (loss, ref)

    # second check: ragged batch across >1 grid blocks (partial-tile masking),
    # re-weighting enabled, and bf16 logits (reduced-HBM-traffic path).
    loss_mod2 = LDAMLossJax(cls_num_list=cls_num_list, max_m=0.5, s=30, reweight_epoch=0)
    loss_mod2._hook_before_epoch(epoch=1)
    B2 = 10
    logits2 = (jax.random.normal(k3, (B2, C), jnp.float32) * 2.0).astype(jnp.bfloat16)
    target2 = jax.random.randint(k2, (B2,), 0, C, jnp.int32)
    loss2 = loss_mod2.forward(logits2, target2)
    jax.block_until_ready(loss2)
    ref2 = _reference_loss(logits2.astype(jnp.float32), target2, loss_mod2.m_list,
                           loss_mod2.s, loss_mod2.per_cls_weights)
    assert jnp.allclose(loss2, ref2, rtol=1e-3, atol=1e-3), (loss2, ref2)

    print("KERNEL_OK")
</pallas_src>

<mosaic_0001>
module attributes {stable_mosaic.version = 11 : i64} {
  func.func @kernel(%arg0: i32, %arg1: memref<8x16xf32, #tpu.memory_space<vmem>>, %arg2: memref<8x1xi32, #tpu.memory_space<vmem>>, %arg3: memref<8x1xf32, #tpu.memory_space<vmem>>, %arg4: memref<8x1xf32, #tpu.memory_space<vmem>>, %arg5: memref<8x128xf32, #tpu.memory_space<vmem>>) attributes {dimension_semantics = [#tpu.dimension_semantics<parallel>], iteration_bounds = array<i64: 1>, scalar_prefetch = 0 : i64, scratch_operands = 0 : i64, tpu.core_type = #tpu.core_type<tc>, window_params = [{transform_indices = @transform_0, window_bounds = array<i64: 8, 16>}, {transform_indices = @transform_1, window_bounds = array<i64: 8, 1>}, {transform_indices = @transform_2, window_bounds = array<i64: 8, 1>}, {transform_indices = @transform_3, window_bounds = array<i64: 8, 1>}, {transform_indices = @transform_4, window_bounds = array<i64: 8, 128>}]} {
    %c0 = arith.constant 0 : index
    %c0_0 = arith.constant 0 : index
    %0 = vector.load %arg1[%c0, %c0_0] : memref<8x16xf32, #tpu.memory_space<vmem>>, vector<8x16xf32>
    %c0_1 = arith.constant 0 : index
    %c0_2 = arith.constant 0 : index
    %1 = vector.load %arg2[%c0_1, %c0_2] : memref<8x1xi32, #tpu.memory_space<vmem>>, vector<8x1xi32>
    %c0_3 = arith.constant 0 : index
    %c0_4 = arith.constant 0 : index
    %2 = vector.load %arg3[%c0_3, %c0_4] : memref<8x1xf32, #tpu.memory_space<vmem>>, vector<8x1xf32>
    %c0_5 = arith.constant 0 : index
    %c0_6 = arith.constant 0 : index
    %3 = vector.load %arg4[%c0_5, %c0_6] : memref<8x1xf32, #tpu.memory_space<vmem>>, vector<8x1xf32>
    %4 = tpu.iota {dimensions = array<i32: 1>} : vector<8x16xi32>
    %5 = vector.broadcast %1 : vector<8x1xi32> to vector<8x16xi32>
    %6 = arith.cmpi eq, %4, %5 : vector<8x16xi32>
    %cst = arith.constant dense<0xFF800000> : vector<8xf32>
    %7 = vector.multi_reduction <maximumf>, %0, %cst [1] : vector<8x16xf32> to vector<8xf32>
    %8 = vector.shape_cast %7 : vector<8xf32> to vector<8x1xf32>
    %9 = vector.broadcast %8 : vector<8x1xf32> to vector<8x16xf32>
    %10 = arith.subf %0, %9 : vector<8x16xf32>
    %11 = math.exp %10 : vector<8x16xf32>
    %cst_7 = arith.constant 0.000000e+00 : f32
    %12 = vector.broadcast %cst_7 : f32 to vector<8x16xf32>
    %13 = arith.select %6, %12, %11 : vector<8x16xi1>, vector<8x16xf32>
    %cst_8 = arith.constant dense<0.000000e+00> : vector<8xf32>
    %14 = vector.multi_reduction <add>, %13, %cst_8 [1] : vector<8x16xf32> to vector<8xf32>
    %15 = vector.shape_cast %14 : vector<8xf32> to vector<8x1xf32>
    %cst_9 = arith.constant 0.000000e+00 : f32
    %16 = vector.broadcast %cst_9 : f32 to vector<8x16xf32>
    %17 = arith.select %6, %0, %16 : vector<8x16xi1>, vector<8x16xf32>
    %cst_10 = arith.constant dense<0.000000e+00> : vector<8xf32>
    %18 = vector.multi_reduction <add>, %17, %cst_10 [1] : vector<8x16xf32> to vector<8xf32>
    %19 = vector.shape_cast %18 : vector<8xf32> to vector<8x1xf32>
    %20 = arith.subf %19, %2 : vector<8x1xf32>
    %21 = arith.subf %20, %8 : vector<8x1xf32>
    %22 = math.exp %21 : vector<8x1xf32>
    %23 = arith.addf %15, %22 : vector<8x1xf32>
    %24 = math.log %23 : vector<8x1xf32>
    %25 = arith.addf %8, %24 : vector<8x1xf32>
    %26 = arith.subf %25, %20 : vector<8x1xf32>
    %27 = arith.mulf %3, %26 : vector<8x1xf32>
    %28 = vector.shape_cast %27 : vector<8x1xf32> to vector<1x8x1xf32>
    %cst_11 = arith.constant dense<0.000000e+00> : vector<1xf32>
    %29 = vector.multi_reduction <add>, %28, %cst_11 [1, 2] : vector<1x8x1xf32> to vector<1xf32>
    %30 = vector.shape_cast %29 : vector<1xf32> to vector<1x1x1xf32>
    %31 = vector.extract %30[0, 0, 0] : f32 from vector<1x1x1xf32>
    %32 = vector.shape_cast %3 : vector<8x1xf32> to vector<1x8x1xf32>
    %cst_12 = arith.constant dense<0.000000e+00> : vector<1xf32>
    %33 = vector.multi_reduction <add>, %32, %cst_12 [1, 2] : vector<1x8x1xf32> to vector<1xf32>
    %34 = vector.shape_cast %33 : vector<1xf32> to vector<1x1x1xf32>
    %35 = vector.extract %34[0, 0, 0] : f32 from vector<1x1x1xf32>
    %36 = tpu.iota {dimensions = array<i32: 1>} : vector<8x128xi32>
    %c64_i32 = arith.constant 64 : i32
    %37 = vector.broadcast %c64_i32 : i32 to vector<8x128xi32>
    %38 = arith.cmpi slt, %36, %37 : vector<8x128xi32>
    %39 = vector.broadcast %31 : f32 to vector<8x128xf32>
    %40 = vector.broadcast %35 : f32 to vector<8x128xf32>
    %41 = arith.select %38, %39, %40 : vector<8x128xi1>, vector<8x128xf32>
    %c0_13 = arith.constant 0 : index
    %c0_14 = arith.constant 0 : index
    %42 = vector.load %arg5[%c0_13, %c0_14] : memref<8x128xf32, #tpu.memory_space<vmem>>, vector<8x128xf32>
    tpu.vector_store %arg5[%c0_13, %c0_14], %41 {strides = array<i32>} : memref<8x128xf32, #tpu.memory_space<vmem>>, vector<8x128xf32>,
    return
  }
  func.func @transform_0(%arg0: i32) -> (i32, i32) {
    %c0_i32 = arith.constant 0 : i32
    %c0_i32_0 = arith.constant 0 : i32
    return %arg0, %c0_i32 : i32, i32
  }
  func.func @transform_1(%arg0: i32) -> (i32, i32) {
    %c0_i32 = arith.constant 0 : i32
    %c0_i32_0 = arith.constant 0 : i32
    return %arg0, %c0_i32 : i32, i32
  }
  func.func @transform_2(%arg0: i32) -> (i32, i32) {
    %c0_i32 = arith.constant 0 : i32
    %c0_i32_0 = arith.constant 0 : i32
    return %arg0, %c0_i32 : i32, i32
  }
  func.func @transform_3(%arg0: i32) -> (i32, i32) {
    %c0_i32 = arith.constant 0 : i32
    %c0_i32_0 = arith.constant 0 : i32
    return %arg0, %c0_i32 : i32, i32
  }
  func.func @transform_4(%arg0: i32) -> (i32, i32) {
    %c0_i32 = arith.constant 0 : i32
    %c0_i32_0 = arith.constant 0 : i32
    return %arg0, %c0_i32 : i32, i32
  }
}

</mosaic_0001>

<llo_original>
// kernel: tpu_custom_call.1
$region0: #{tpu_custom_call.1}
  #allocation0 [shape = 'u32[]', space=smem, size = 0x4, offset = 0x4, fixed_abs, tag = 'smem constant byte address 0x4 - core index']
  #allocation1 [shape = 'u32[144,128]{1,0:T(1,128)}', space=vmem, size = 0x12000, scoped, tag = 'internal scratch']
  %s0 = inlined_call_operand.vmem [shape: f32[8,16], index: 0, kind: input, shape index: {}]
  %s1 = inlined_call_operand.vmem [shape: s32[8,1], index: 1, kind: input, shape index: {}]
  %s2 = inlined_call_operand.vmem [shape: f32[8,1], index: 2, kind: input, shape index: {}]
  %s3 = inlined_call_operand.vmem [shape: f32[8,1], index: 3, kind: input, shape index: {}]
  %s4 = inlined_call_operand.hbm [shape: f32[8,128], index: 4, kind: output, shape index: {}]
  %s5 = sld [smem:[#allocation0]]
  $region26: #{tpu_custom_call.1} parent=0
    _
  %s7 = ssub.s32 1, %s5
  %s8 = scalar_select 0, %s7, %s5
  $region1: #{tpu_custom_call.1} parent=0
    #allocation2 [shape = 'u8[4096]{0}', space=vmem, size = 0x1000, scoped, tag = 'output window, operand 0, single buffered']
    #allocation3 [shape = 's32[1]{0}', space=sflag, size = 0x4, scoped, tag = 'scoped memory for tpu_custom_call.1']
    %9 = vsyncpa [#allocation3], 0
    // Predicated region
    $region2: #{tpu_custom_call.1} parent=1 // pred_check
      _
    $region3: #{tpu_custom_call.1} parent=1 // pred_check_branch
      %11 = sbr.rel (0) target = $region5
    $region4: #{tpu_custom_call.1} parent=1 // pred_region
      _
    $region5: #{tpu_custom_call.1} parent=1 // pred_fallthru
      _
    // Predicated region
    $region6: #{tpu_custom_call.1} parent=1 // pred_check
      _
    $region7: #{tpu_custom_call.1} parent=1 // pred_check_branch
      %13 = sbr.rel (0) target = $region9
    $region8: #{tpu_custom_call.1} parent=1 // pred_region
      _
    $region9: #{tpu_custom_call.1} parent=1 // pred_fallthru
      _
    // Predicated region
    $region10: #{tpu_custom_call.1} parent=1 // pred_check
      _
    $region11: #{tpu_custom_call.1} parent=1 // pred_check_branch
      %15 = sbr.rel (0) target = $region13
    $region12: #{tpu_custom_call.1} parent=1 // pred_region
      _
    $region13: #{tpu_custom_call.1} parent=1 // pred_fallthru
      _
    // Predicated region
    $region14: #{tpu_custom_call.1} parent=1 // pred_check
      _
    $region15: #{tpu_custom_call.1} parent=1 // pred_check_branch
      %17 = sbr.rel (0) target = $region17
    $region16: #{tpu_custom_call.1} parent=1 // pred_region
      _
    $region17: #{tpu_custom_call.1} parent=1 // pred_fallthru
      _
    %v18 = vld [vmem:[%s0] sm:$0xff]
    %v19 = vld [vmem:[%s1] sm:$0xff]
    %v20 = vld [vmem:[%s2] sm:$0xff]
    %v21 = vld [vmem:[%s3] sm:$0xff]
    %v22 = vlaneseq
    %v23 = vand.u32 %v22, 127
    %24 = vset.pattern.permute.xlu0 0
    %25 = vperm.xlu0 %24, %v19
    %v26 = vpop.permute.xlu0 %25
    %vm27 = vcmp.eq.s32.totalorder %v23, %v26
    %vm28 = vcmask 130048
    %v29 = vsel %vm28, %v18, -inf
    %30 = vmax.xlane.f32.xlu0 %v29
    %v31 = vpop.xlane.xlu0 %30
    %v32 = vsub.f32 %v18, %v31
    %v33 = vmul.f32 %v32, 1.442695
    %v34 = vpow.pop %v33
    %v35 = vsel %vm27, 0.0, %v34
    %v36 = vsel %vm28, %v35, 0.0
    %37 = vadd.xlane.f32.xlu0 %v36
    %v38 = vpop.xlane.xlu0 %37
    %v39 = vsel %vm27, %v18, 0.0
    %v40 = vsel %vm28, %v39, 0.0
    %41 = vadd.xlane.f32.xlu0 %v40
    %v42 = vpop.xlane.xlu0 %41
    %v43 = vsub.f32 %v42, %v20
    %v44 = vsub.f32 %v43, %v31
    %v45 = vmul.f32 %v44, 1.442695
    %v46 = vpow.pop %v45
    %v47 = vadd.f32 %v38, %v46
    %v48 = vlog2.pop %v47
    %v49 = vmul.f32 %v48, 0.6931472
    %v50 = vadd.f32 %v31, %v49
    %v51 = vsub.f32 %v50, %v43
    %v52 = vmul.f32 %v21, %v51
    %vm53 = vcmask 7168
    %v54 = vsel %vm53, %v52, 0.0
    %55 = vadd.xlane.f32.xlu0 %v54
    %v56 = vpop.xlane.xlu0 %55
    %v57 = vrot.slane %v56, 4
    %v58 = vadd.f32 %v56, %v57
    %v59 = vrot.slane %v58, 2
    %v60 = vadd.f32 %v58, %v59
    %v61 = vrot.slane %v60, 1
    %v62 = vadd.f32 %v60, %v61
    %s63 = vtos %v62
    %v64 = vsel %vm53, %v21, 0.0
    %65 = vadd.xlane.f32.xlu0 %v64
    %v66 = vpop.xlane.xlu0 %65
    %v67 = vrot.slane %v66, 4
    %v68 = vadd.f32 %v66, %v67
    %v69 = vrot.slane %v68, 2
    %v70 = vadd.f32 %v68, %v69
    %v71 = vrot.slane %v70, 1
    %v72 = vadd.f32 %v70, %v71
    %s73 = vtos %v72
    %vm74 = vcmp.lt.s32.totalorder %v23, 64
    %v75 = vstv %s63
    %v76 = vstv %s73
    %v77 = vsel %vm74, %v75, %v76
    %78 = vst [vmem:[#allocation2] sm:$0xff] %v77
    // Predicated region
    $region18: #{tpu_custom_call.1} parent=1 // pred_check
      _
    $region19: #{tpu_custom_call.1} parent=1 // pred_check_branch
      %80 = sbr.rel (0) target = $region21
    $region20: #{tpu_custom_call.1} parent=1 // pred_region
      %s82 = ssub.s32 128, 128
      %83 = vsyncadd [#allocation3], %s82
      %s85 = sshll.u32 [#allocation2], 4
      %s86 = int_to_ptr.vmem [resolvable:$true] %s85
      %88 = dma.vmem_to_hbm [thread:$0]  %s86, 128, %s4, [#allocation3]
    $region21: #{tpu_custom_call.1} parent=1 // pred_fallthru
      _
    // Predicated region
    $region22: #{tpu_custom_call.1} parent=1 // pred_check
      _
    $region23: #{tpu_custom_call.1} parent=1 // pred_check_branch
      %90 = sbr.rel (0) target = $region25
    $region24: #{tpu_custom_call.1} parent=1 // pred_region
      %91 = dma.done [#allocation3], 128
    $region25: #{tpu_custom_call.1} parent=1 // pred_fallthru
      _
    %92 = vsyncpa [#allocation3], 1

</llo_original>
